<compile_context>
chip_gen: v5e
topology: v5e:2x2
jax: 0.10.0
libtpu: 0.0.40
codegen_flags: <defaults>
</compile_context>

<pallas_src>
import functools

import jax
import jax.numpy as jnp
from jax.experimental import pallas as pl
from jax.experimental.pallas import tpu as pltpu

_LANES = 128        # native lane width
_TILE_LANES = 1024  # lane extent of one block (multiple of 128)


def _round_up(x, m):
    return ((x + m - 1) // m) * m


@functools.lru_cache(maxsize=None)
def _tile_rows_cap():
    """Per-generation tile-row cap sized against default scoped VMEM."""
    try:
        kind = jax.devices()[0].device_kind.lower()
    except Exception:  # pragma: no cover - defensive
        return 256
    if ("v6" in kind) or ("v7" in kind) or ("7x" in kind):
        return 1024     # 3 x 2 x 4 MiB = 24 MiB < 32 MiB default scoped VMEM
    if "v5" in kind:
        return 512      # 3 x 2 x 2 MiB = 12 MiB < 16 MiB default scoped VMEM
    return 256          # conservative fallback (6 MiB) for unknown chips


def _secure_mse_partial_kernel(yt_ref, yd_ref, ye_ref, out_ref, *,
                               valid_rows, mask_needed):
    """Per-block partial SSE for destination / eavesdropper channels.

    Inputs are (TR, TL) lane-dense f32 slabs.  Everything stays elementwise on
    the VPU except one cross-sublane reduce per quantity; the cross-lane
    reduce, mean and weighted combine happen in the wrapper.
    """
    yt = yt_ref[...].astype(jnp.float32)
    dd = yt - yd_ref[...].astype(jnp.float32)   # destination residual
    de = yt - ye_ref[...].astype(jnp.float32)   # eavesdropper residual
    dd2 = dd * dd
    de2 = de * de

    # Fold the lane axis down to one 128-wide strip per quantity using
    # vreg-aligned static slices (pure VPU adds), ...
    n_folds = dd2.shape[1] // _LANES
    acc_d = dd2[:, 0:_LANES]
    acc_e = de2[:, 0:_LANES]
    for k in range(1, n_folds):
        lo = k * _LANES
        acc_d = acc_d + dd2[:, lo:lo + _LANES]
        acc_e = acc_e + de2[:, lo:lo + _LANES]

    if mask_needed:
        # Partial boundary block: rows >= valid_rows hold *undefined* data
        # (not zeros).  The lane folds only mix lanes within a row, so masking
        # the folded (tr, 128) strips is sufficient and cheap.
        tr = acc_d.shape[0]
        rows_left = valid_rows - pl.program_id(0) * tr
        row_idx = jax.lax.broadcasted_iota(jnp.int32, acc_d.shape, 0)
        valid = row_idx < rows_left
        acc_d = jnp.where(valid, acc_d, 0.0)
        acc_e = jnp.where(valid, acc_e, 0.0)

    # One cross-sublane reduce per quantity, one lane-dense (2,128) store.
    out_ref[0, :, :] = jnp.concatenate(
        [jnp.sum(acc_d, axis=0, keepdims=True),
         jnp.sum(acc_e, axis=0, keepdims=True)], axis=0)


@jax.jit
def secure_loss_reconstruction(y_true, y_pred, weight=0.3):
    """Pallas implementation of secure_loss_reconstruction.forward (MSE losses).

    y_true: [B, C, H, W]
    y_pred: [B, C, H, W, 2]  (last dim: 0 = destination, 1 = eavesdropper)
    returns: scalar float32 loss
    """
    B, C, H, W = y_true.shape
    assert y_pred.shape == (B, C, H, W, 2)
    total = B * C * H * W
    tl = _TILE_LANES

    # Channel split (single fused XLA slice pass) -- see TODO(synk) above.
    yt = y_true.reshape(-1)
    yd = y_pred[..., 0].reshape(-1)
    ye = y_pred[..., 1].reshape(-1)

    # Pad only up to a multiple of one lane row (zeros -> zero residuals).
    # When total % 1024 == 0 (common for image tensors) this is a no-op and
    # y_true is passed as a zero-copy bitcast reshape.
    rows = pl.cdiv(total, tl)
    pad = rows * tl - total
    if pad:
        yt = jnp.pad(yt, (0, pad))
        yd = jnp.pad(yd, (0, pad))
        ye = jnp.pad(ye, (0, pad))
    yt = yt.reshape(rows, tl)
    yd = yd.reshape(rows, tl)
    ye = ye.reshape(rows, tl)

    # Tile rows: as big as the generation's scoped VMEM allows, but capped so
    # there are >= 2 blocks for the v7x megacore when the problem is big
    # enough.  A ragged last block is allowed (masked in-kernel).
    tr_cap = _tile_rows_cap()
    tr = min(tr_cap, _round_up(pl.cdiv(rows, 2), 8))
    if tr >= rows:
        tr = rows            # single full-extent block (no mask needed)
    num_blocks = pl.cdiv(rows, tr)
    mask_needed = (rows % tr) != 0

    kernel = functools.partial(_secure_mse_partial_kernel,
                               valid_rows=rows, mask_needed=mask_needed)

    in_spec = pl.BlockSpec((tr, tl), lambda i: (i, 0))
    out_spec = pl.BlockSpec((1, 2, _LANES), lambda i: (i, 0, 0))

    big = tr_cap >= 1024
    partials = pl.pallas_call(
        kernel,
        out_shape=jax.ShapeDtypeStruct((num_blocks, 2, _LANES), jnp.float32),
        grid=(num_blocks,),
        in_specs=[in_spec, in_spec, in_spec],
        out_specs=out_spec,
        compiler_params=pltpu.CompilerParams(
            dimension_semantics=("parallel",),
            # Let XLA fuse the slice/pad/reshape producers into the call
            # instead of materializing separate HBM slabs.
            allow_input_fusion=[True, True, True],
            # Headroom for the 4 MiB/input tiles on v6e/v7x; None keeps the
            # (sufficient) defaults elsewhere.
            vmem_limit_bytes=(40 * 1024 * 1024) if big else None,
        ),
        cost_estimate=pl.CostEstimate(
            flops=6 * rows * tl,
            transcendentals=0,
            bytes_accessed=3 * rows * tl * 4 + num_blocks * 2 * _LANES * 4,
        ),
    )(yt, yd, ye)

    dest_sse = jnp.sum(partials[:, 0, :])
    eaves_sse = jnp.sum(partials[:, 1, :])
    inv_n = 1.0 / total
    return dest_sse * inv_n + weight * (eaves_sse * inv_n)


def _reference_loss(y_true, y_pred, weight=0.3):
    yt = y_true.astype(jnp.float32)
    dest = jnp.mean((yt - y_pred[..., 0].astype(jnp.float32)) ** 2)
    eaves = jnp.mean((yt - y_pred[..., 1].astype(jnp.float32)) ** 2)
    return dest + weight * eaves


if __name__ == "__main__":
    key = jax.random.PRNGKey(0)
    k1, k2, k3, k4 = jax.random.split(key, 4)

    # Small shape from the module spec: single full-extent block, no masking.
    B, C, H, W = 2, 4, 16, 16
    y_true = jax.random.normal(k1, (B, C, H, W), dtype=jnp.float32)
    y_pred = jax.random.normal(k2, (B, C, H, W, 2), dtype=jnp.float32)
    loss = jax.block_until_ready(
        secure_loss_reconstruction(y_true, y_pred, weight=0.3))
    ref = jax.block_until_ready(_reference_loss(y_true, y_pred, weight=0.3))
    assert jnp.allclose(loss, ref, rtol=1e-5, atol=1e-6), (loss, ref)

    # Shape exercising the multi-block grid and the masked partial last block
    # (9 rows of 1024 elements, tile rows = 8 -> 1 valid row in block 1).
    B2, C2, H2, W2 = 2, 4, 32, 36
    y_true2 = jax.random.normal(k3, (B2, C2, H2, W2), dtype=jnp.float32)
    y_pred2 = jax.random.normal(k4, (B2, C2, H2, W2, 2), dtype=jnp.float32)
    loss2 = jax.block_until_ready(
        secure_loss_reconstruction(y_true2, y_pred2, weight=0.3))
    ref2 = jax.block_until_ready(_reference_loss(y_true2, y_pred2, weight=0.3))
    assert jnp.allclose(loss2, ref2, rtol=1e-5, atol=1e-6), (loss2, ref2)

    print("KERNEL_OK")
</pallas_src>

<mosaic_0001>
module attributes {stable_mosaic.version = 11 : i64} {
  func.func @_secure_mse_partial_kernel(%arg0: i32, %arg1: memref<2x1024xf32, #tpu.memory_space<vmem>>, %arg2: memref<2x1024xf32, #tpu.memory_space<vmem>>, %arg3: memref<2x1024xf32, #tpu.memory_space<vmem>>, %arg4: memref<1x2x128xf32, #tpu.memory_space<vmem>>) attributes {dimension_semantics = [#tpu.dimension_semantics<parallel>], iteration_bounds = array<i64: 1>, scalar_prefetch = 0 : i64, scratch_operands = 0 : i64, tpu.core_type = #tpu.core_type<tc>, window_params = [{transform_indices = @transform_0, window_bounds = array<i64: 2, 1024>}, {transform_indices = @transform_1, window_bounds = array<i64: 2, 1024>}, {transform_indices = @transform_2, window_bounds = array<i64: 2, 1024>}, {transform_indices = @transform_3, window_bounds = array<i64: 1, 2, 128>}]} {
    %c0 = arith.constant 0 : index
    %c0_0 = arith.constant 0 : index
    %0 = vector.load %arg1[%c0, %c0_0] : memref<2x1024xf32, #tpu.memory_space<vmem>>, vector<2x1024xf32>
    %c0_1 = arith.constant 0 : index
    %c0_2 = arith.constant 0 : index
    %1 = vector.load %arg2[%c0_1, %c0_2] : memref<2x1024xf32, #tpu.memory_space<vmem>>, vector<2x1024xf32>
    %2 = arith.subf %0, %1 : vector<2x1024xf32>
    %c0_3 = arith.constant 0 : index
    %c0_4 = arith.constant 0 : index
    %3 = vector.load %arg3[%c0_3, %c0_4] : memref<2x1024xf32, #tpu.memory_space<vmem>>, vector<2x1024xf32>
    %4 = arith.subf %0, %3 : vector<2x1024xf32>
    %5 = arith.mulf %2, %2 : vector<2x1024xf32>
    %6 = arith.mulf %4, %4 : vector<2x1024xf32>
    %7 = vector.extract_strided_slice %5 {offsets = [0, 0], sizes = [2, 128], strides = [1, 1]} : vector<2x1024xf32> to vector<2x128xf32>
    %8 = vector.extract_strided_slice %6 {offsets = [0, 0], sizes = [2, 128], strides = [1, 1]} : vector<2x1024xf32> to vector<2x128xf32>
    %9 = vector.extract_strided_slice %5 {offsets = [0, 128], sizes = [2, 128], strides = [1, 1]} : vector<2x1024xf32> to vector<2x128xf32>
    %10 = arith.addf %7, %9 : vector<2x128xf32>
    %11 = vector.extract_strided_slice %6 {offsets = [0, 128], sizes = [2, 128], strides = [1, 1]} : vector<2x1024xf32> to vector<2x128xf32>
    %12 = arith.addf %8, %11 : vector<2x128xf32>
    %13 = vector.extract_strided_slice %5 {offsets = [0, 256], sizes = [2, 128], strides = [1, 1]} : vector<2x1024xf32> to vector<2x128xf32>
    %14 = arith.addf %10, %13 : vector<2x128xf32>
    %15 = vector.extract_strided_slice %6 {offsets = [0, 256], sizes = [2, 128], strides = [1, 1]} : vector<2x1024xf32> to vector<2x128xf32>
    %16 = arith.addf %12, %15 : vector<2x128xf32>
    %17 = vector.extract_strided_slice %5 {offsets = [0, 384], sizes = [2, 128], strides = [1, 1]} : vector<2x1024xf32> to vector<2x128xf32>
    %18 = arith.addf %14, %17 : vector<2x128xf32>
    %19 = vector.extract_strided_slice %6 {offsets = [0, 384], sizes = [2, 128], strides = [1, 1]} : vector<2x1024xf32> to vector<2x128xf32>
    %20 = arith.addf %16, %19 : vector<2x128xf32>
    %21 = vector.extract_strided_slice %5 {offsets = [0, 512], sizes = [2, 128], strides = [1, 1]} : vector<2x1024xf32> to vector<2x128xf32>
    %22 = arith.addf %18, %21 : vector<2x128xf32>
    %23 = vector.extract_strided_slice %6 {offsets = [0, 512], sizes = [2, 128], strides = [1, 1]} : vector<2x1024xf32> to vector<2x128xf32>
    %24 = arith.addf %20, %23 : vector<2x128xf32>
    %25 = vector.extract_strided_slice %5 {offsets = [0, 640], sizes = [2, 128], strides = [1, 1]} : vector<2x1024xf32> to vector<2x128xf32>
    %26 = arith.addf %22, %25 : vector<2x128xf32>
    %27 = vector.extract_strided_slice %6 {offsets = [0, 640], sizes = [2, 128], strides = [1, 1]} : vector<2x1024xf32> to vector<2x128xf32>
    %28 = arith.addf %24, %27 : vector<2x128xf32>
    %29 = vector.extract_strided_slice %5 {offsets = [0, 768], sizes = [2, 128], strides = [1, 1]} : vector<2x1024xf32> to vector<2x128xf32>
    %30 = arith.addf %26, %29 : vector<2x128xf32>
    %31 = vector.extract_strided_slice %6 {offsets = [0, 768], sizes = [2, 128], strides = [1, 1]} : vector<2x1024xf32> to vector<2x128xf32>
    %32 = arith.addf %28, %31 : vector<2x128xf32>
    %33 = vector.extract_strided_slice %5 {offsets = [0, 896], sizes = [2, 128], strides = [1, 1]} : vector<2x1024xf32> to vector<2x128xf32>
    %34 = arith.addf %30, %33 : vector<2x128xf32>
    %35 = vector.extract_strided_slice %6 {offsets = [0, 896], sizes = [2, 128], strides = [1, 1]} : vector<2x1024xf32> to vector<2x128xf32>
    %36 = arith.addf %32, %35 : vector<2x128xf32>
    %cst = arith.constant dense<0.000000e+00> : vector<128xf32>
    %37 = vector.multi_reduction <add>, %34, %cst [0] : vector<2x128xf32> to vector<128xf32>
    %38 = vector.shape_cast %37 : vector<128xf32> to vector<1x128xf32>
    %cst_5 = arith.constant dense<0.000000e+00> : vector<128xf32>
    %39 = vector.multi_reduction <add>, %36, %cst_5 [0] : vector<2x128xf32> to vector<128xf32>
    %40 = vector.shape_cast %39 : vector<128xf32> to vector<1x128xf32>
    %41 = tpu.concatenate %38, %40 in 0 : vector<1x128xf32>, vector<1x128xf32> -> vector<2x128xf32>
    %c0_6 = arith.constant 0 : index
    %c0_7 = arith.constant 0 : index
    %c0_8 = arith.constant 0 : index
    %42 = vector.load %arg4[%c0_6, %c0_7, %c0_8] : memref<1x2x128xf32, #tpu.memory_space<vmem>>, vector<1x2x128xf32>
    %43 = vector.shape_cast %42 : vector<1x2x128xf32> to vector<2x128xf32>
    %44 = vector.shape_cast %41 : vector<2x128xf32> to vector<1x2x128xf32>
    tpu.vector_store %arg4[%c0_6, %c0_7, %c0_8], %44 {strides = array<i32>} : memref<1x2x128xf32, #tpu.memory_space<vmem>>, vector<1x2x128xf32>,
    return
  }
  func.func @transform_0(%arg0: i32) -> (i32, i32) {
    %c0_i32 = arith.constant 0 : i32
    %c0_i32_0 = arith.constant 0 : i32
    return %arg0, %c0_i32 : i32, i32
  }
  func.func @transform_1(%arg0: i32) -> (i32, i32) {
    %c0_i32 = arith.constant 0 : i32
    %c0_i32_0 = arith.constant 0 : i32
    return %arg0, %c0_i32 : i32, i32
  }
  func.func @transform_2(%arg0: i32) -> (i32, i32) {
    %c0_i32 = arith.constant 0 : i32
    %c0_i32_0 = arith.constant 0 : i32
    return %arg0, %c0_i32 : i32, i32
  }
  func.func @transform_3(%arg0: i32) -> (i32, i32, i32) {
    %c0_i32 = arith.constant 0 : i32
    %c0_i32_0 = arith.constant 0 : i32
    %c0_i32_1 = arith.constant 0 : i32
    return %arg0, %c0_i32, %c0_i32_0 : i32, i32, i32
  }
}

</mosaic_0001>

<llo_original>
// kernel: squeeze.4
$region0: #{squeeze.4}
  %s0 = inlined_call_operand.vmem [shape: f32[2,4,16,16], index: 0, kind: input, shape index: {}]
  %s1 = inlined_call_operand.vmem [shape: f32[2,1024], index: 1, kind: output, shape index: {}]
  $region1: #{squeeze.4} parent=0
    #allocation0 [shape = 'u8[32768]{0}', space=vmem, size = 0x8000, scoped, tag = 'scoped mem for output reshape']
    %v2 = vld [vmem:[%s0] ss:$8 sm:$0xf]
    %v3 = vld [vmem:[%s0] ss:$8 sm:$0xf0]
    %vm4 = vcmask 1047556
    %v5 = vsel %vm4, %v3, %v2
    %vm6 = vcmask 130048
    %7 = vst.msk [vmem:[#allocation0] ss:$8 sm:$0xf] %vm6, %v5
    %8 = vst.msk [vmem:[#allocation0] ss:$8 sm:$0xf0] %vm6, %v5
    %s9 = scalar_lea.vmem %s0, 64
    %v10 = vld [vmem:[%s9] ss:$8 sm:$0xf]
    %s11 = scalar_lea.vmem %s0, 64
    %v12 = vld [vmem:[%s11] ss:$8 sm:$0xf0]
    %vm13 = vcmask 1047556
    %v14 = vsel %vm13, %v12, %v10
    %vm15 = vcmask 130048
    %s16 = scalar_lea.vmem [#allocation0], 1
    %17 = vst.msk [vmem:[%s16] ss:$8 sm:$0xf] %vm15, %v14
    %s18 = scalar_lea.vmem [#allocation0], 1
    %19 = vst.msk [vmem:[%s18] ss:$8 sm:$0xf0] %vm15, %v14
    %s20 = scalar_lea.vmem %s0, 7
    %v21 = vld [vmem:[%s20] sm:$0x1]
    %s22 = scalar_lea.vmem %s0, 127
    %s23 = smov 6
    %v24 = vld [vmem:[%s22] ss:$-56 sm:%s23]
    %vm25 = vcmask 1042433
    %v26 = vsel %vm25, %v24, %v21
    %s27 = scalar_lea.vmem %s0, 247
    %s28 = smov 24
    %v29 = vld [vmem:[%s27] ss:$-56 sm:%s28]
    %vm30 = vcmask 1044483
    %v31 = vsel %vm30, %v29, %v26
    %s32 = scalar_lea.vmem %s0, 367
    %s33 = smov 96
    %v34 = vld [vmem:[%s32] ss:$-56 sm:%s33]
    %vm35 = vcmask 1046533
    %v36 = vsel %vm35, %v34, %v31
    %s37 = scalar_lea.vmem %s0, 88
    %v38 = vld [vmem:[%s37] sm:$0x80]
    %vm39 = vcmask 1047559
    %v40 = vsel %vm39, %v38, %v36
    %41 = vrot.lane.b32.xlu0 %v40, 112
    %v42 = vpop.permute.xlu0 %41
    %vm43 = vcmask 1048448
    %44 = vst.msk [vmem:[#allocation0] sm:$0x3] %vm43, %v42
    %s45 = scalar_lea.vmem [#allocation0], 6
    %46 = vst.msk [vmem:[%s45] sm:$0xc] %vm43, %v42
    %s47 = scalar_lea.vmem [#allocation0], 12
    %48 = vst.msk [vmem:[%s47] sm:$0x30] %vm43, %v42
    %s49 = scalar_lea.vmem [#allocation0], 18
    %50 = vst.msk [vmem:[%s49] sm:$0xc0] %vm43, %v42
    %s51 = scalar_lea.vmem %s0, 39
    %v52 = vld [vmem:[%s51] sm:$0x1]
    %s53 = scalar_lea.vmem %s0, 159
    %s54 = smov 6
    %v55 = vld [vmem:[%s53] ss:$-56 sm:%s54]
    %vm56 = vcmask 1042433
    %v57 = vsel %vm56, %v55, %v52
    %s58 = scalar_lea.vmem %s0, 279
    %s59 = smov 24
    %v60 = vld [vmem:[%s58] ss:$-56 sm:%s59]
    %vm61 = vcmask 1044483
    %v62 = vsel %vm61, %v60, %v57
    %s63 = scalar_lea.vmem %s0, 399
    %s64 = smov 96
    %v65 = vld [vmem:[%s63] ss:$-56 sm:%s64]
    %vm66 = vcmask 1046533
    %v67 = vsel %vm66, %v65, %v62
    %s68 = scalar_lea.vmem %s0, 120
    %v69 = vld [vmem:[%s68] sm:$0x80]
    %vm70 = vcmask 1047559
    %v71 = vsel %vm70, %v69, %v67
    %72 = vrot.lane.b32.xlu0 %v71, 112
    %v73 = vpop.permute.xlu0 %72
    %vm74 = vcmask 1048448
    %s75 = scalar_lea.vmem [#allocation0], 32
    %76 = vst.msk [vmem:[%s75] sm:$0x3] %vm74, %v73
    %s77 = scalar_lea.vmem [#allocation0], 38
    %78 = vst.msk [vmem:[%s77] sm:$0xc] %vm74, %v73
    %s79 = scalar_lea.vmem [#allocation0], 44
    %80 = vst.msk [vmem:[%s79] sm:$0x30] %vm74, %v73
    %s81 = scalar_lea.vmem [#allocation0], 50
    %82 = vst.msk [vmem:[%s81] sm:$0xc0] %vm74, %v73
    %s83 = scalar_lea.vmem %s0, 6
    %v84 = vld [vmem:[%s83] sm:$0x1]
    %s85 = scalar_lea.vmem %s0, 126
    %s86 = smov 6
    %v87 = vld [vmem:[%s85] ss:$-56 sm:%s86]
    %vm88 = vcmask 1042433
    %v89 = vsel %vm88, %v87, %v84
    %s90 = scalar_lea.vmem %s0, 246
    %s91 = smov 24
    %v92 = vld [vmem:[%s90] ss:$-56 sm:%s91]
    %vm93 = vcmask 1044483
    %v94 = vsel %vm93, %v92, %v89
    %s95 = scalar_lea.vmem %s0, 366
    %s96 = smov 96
    %v97 = vld [vmem:[%s95] ss:$-56 sm:%s96]
    %vm98 = vcmask 1046533
    %v99 = vsel %vm98, %v97, %v94
    %s100 = scalar_lea.vmem %s0, 87
    %v101 = vld [vmem:[%s100] sm:$0x80]
    %vm102 = vcmask 1047559
    %v103 = vsel %vm102, %v101, %v99
    %104 = vrot.lane.b32.xlu0 %v103, 96
    %v105 = vpop.permute.xlu0 %104
    %vm106 = vcmask 917248
    %107 = vst.msk [vmem:[#allocation0] sm:$0x3] %vm106, %v105
    %s108 = scalar_lea.vmem [#allocation0], 6
    %109 = vst.msk [vmem:[%s108] sm:$0xc] %vm106, %v105
    %s110 = scalar_lea.vmem [#allocation0], 12
    %111 = vst.msk [vmem:[%s110] sm:$0x30] %vm106, %v105
    %s112 = scalar_lea.vmem [#allocation0], 18
    %113 = vst.msk [vmem:[%s112] sm:$0xc0] %vm106, %v105
    %s114 = scalar_lea.vmem %s0, 38
    %v115 = vld [vmem:[%s114] sm:$0x1]
    %s116 = scalar_lea.vmem %s0, 158
    %s117 = smov 6
    %v118 = vld [vmem:[%s116] ss:$-56 sm:%s117]
    %vm119 = vcmask 1042433
    %v120 = vsel %vm119, %v118, %v115
    %s121 = scalar_lea.vmem %s0, 278
    %s122 = smov 24
    %v123 = vld [vmem:[%s121] ss:$-56 sm:%s122]
    %vm124 = vcmask 1044483
    %v125 = vsel %vm124, %v123, %v120
    %s126 = scalar_lea.vmem %s0, 398
    %s127 = smov 96
    %v128 = vld [vmem:[%s126] ss:$-56 sm:%s127]
    %vm129 = vcmask 1046533
    %v130 = vsel %vm129, %v128, %v125
    %s131 = scalar_lea.vmem %s0, 119
    %v132 = vld [vmem:[%s131] sm:$0x80]
    %vm133 = vcmask 1047559
    %v134 = vsel %vm133, %v132, %v130
    %135 = vrot.lane.b32.xlu0 %v134, 96
    %v136 = vpop.permute.xlu0 %135
    %vm137 = vcmask 917248
    %s138 = scalar_lea.vmem [#allocation0], 32
    %139 = vst.msk [vmem:[%s138] sm:$0x3] %vm137, %v136
    %s140 = scalar_lea.vmem [#allocation0], 38
    %141 = vst.msk [vmem:[%s140] sm:$0xc] %vm137, %v136
    %s142 = scalar_lea.vmem [#allocation0], 44
    %143 = vst.msk [vmem:[%s142] sm:$0x30] %vm137, %v136
    %s144 = scalar_lea.vmem [#allocation0], 50
    %145 = vst.msk [vmem:[%s144] sm:$0xc0] %vm137, %v136
    %s146 = scalar_lea.vmem %s0, 5
    %v147 = vld [vmem:[%s146] sm:$0x1]
    %s148 = scalar_lea.vmem %s0, 125
    %s149 = smov 6
    %v150 = vld [vmem:[%s148] ss:$-56 sm:%s149]
    %vm151 = vcmask 1042433
    %v152 = vsel %vm151, %v150, %v147
    %s153 = scalar_lea.vmem %s0, 245
    %s154 = smov 24
    %v155 = vld [vmem:[%s153] ss:$-56 sm:%s154]
    %vm156 = vcmask 1044483
    %v157 = vsel %vm156, %v155, %v152
    %s158 = scalar_lea.vmem %s0, 365
    %s159 = smov 96
    %v160 = vld [vmem:[%s158] ss:$-56 sm:%s159]
    %vm161 = vcmask 1046533
    %v162 = vsel %vm161, %v160, %v157
    %s163 = scalar_lea.vmem %s0, 86
    %v164 = vld [vmem:[%s163] sm:$0x80]
    %vm165 = vcmask 1047559
    %v166 = vsel %vm165, %v164, %v162
    %167 = vrot.lane.b32.xlu0 %v166, 80
    %v168 = vpop.permute.xlu0 %167
    %vm169 = vcmask 786048
    %170 = vst.msk [vmem:[#allocation0] sm:$0x3] %vm169, %v168
    %s171 = scalar_lea.vmem [#allocation0], 6
    %172 = vst.msk [vmem:[%s171] sm:$0xc] %vm169, %v168
    %s173 = scalar_lea.vmem [#allocation0], 12
    %174 = vst.msk [vmem:[%s173] sm:$0x30] %vm169, %v168
    %s175 = scalar_lea.vmem [#allocation0], 18
    %176 = vst.msk [vmem:[%s175] sm:$0xc0] %vm169, %v168
    %s177 = scalar_lea.vmem %s0, 37
    %v178 = vld [vmem:[%s177] sm:$0x1]
    %s179 = scalar_lea.vmem %s0, 157
    %s180 = smov 6
    %v181 = vld [vmem:[%s179] ss:$-56 sm:%s180]
    %vm182 = vcmask 1042433
    %v183 = vsel %vm182, %v181, %v178
    %s184 = scalar_lea.vmem %s0, 277
    %s185 = smov 24
    %v186 = vld [vmem:[%s184] ss:$-56 sm:%s185]
    %vm187 = vcmask 1044483
    %v188 = vsel %vm187, %v186, %v183
    %s189 = scalar_lea.vmem %s0, 397
    %s190 = smov 96
    %v191 = vld [vmem:[%s189] ss:$-56 sm:%s190]
    %vm192 = vcmask 1046533
    %v193 = vsel %vm192, %v191, %v188
    %s194 = scalar_lea.vmem %s0, 118
    %v195 = vld [vmem:[%s194] sm:$0x80]
    %vm196 = vcmask 1047559
    %v197 = vsel %vm196, %v195, %v193
    %198 = vrot.lane.b32.xlu0 %v197, 80
    %v199 = vpop.permute.xlu0 %198
    %vm200 = vcmask 786048
    %s201 = scalar_lea.vmem [#allocation0], 32
    %202 = vst.msk [vmem:[%s201] sm:$0x3] %vm200, %v199
    %s203 = scalar_lea.vmem [#allocation0], 38
    %204 = vst.msk [vmem:[%s203] sm:$0xc] %vm200, %v199
    %s205 = scalar_lea.vmem [#allocation0], 44
    %206 = vst.msk [vmem:[%s205] sm:$0x30] %vm200, %v199
    %s207 = scalar_lea.vmem [#allocation0], 50
    %208 = vst.msk [vmem:[%s207] sm:$0xc0] %vm200, %v199
    %s209 = scalar_lea.vmem %s0, 4
    %v210 = vld [vmem:[%s209] sm:$0x1]
    %s211 = scalar_lea.vmem %s0, 124
    %s212 = smov 6
    %v213 = vld [vmem:[%s211] ss:$-56 sm:%s212]
    %vm214 = vcmask 1042433
    %v215 = vsel %vm214, %v213, %v210
    %s216 = scalar_lea.vmem %s0, 244
    %s217 = smov 24
    %v218 = vld [vmem:[%s216] ss:$-56 sm:%s217]
    %vm219 = vcmask 1044483
    %v220 = vsel %vm219, %v218, %v215
    %s221 = scalar_lea.vmem %s0, 364
    %s222 = smov 96
    %v223 = vld [vmem:[%s221] ss:$-56 sm:%s222]
    %vm224 = vcmask 1046533
    %v225 = vsel %vm224, %v223, %v220
    %s226 = scalar_lea.vmem %s0, 85
    %v227 = vld [vmem:[%s226] sm:$0x80]
    %vm228 = vcmask 1047559
    %v229 = vsel %vm228, %v227, %v225
    %230 = vrot.lane.b32.xlu0 %v229, 64
    %v231 = vpop.permute.xlu0 %230
    %vm232 = vcmask 654848
    %233 = vst.msk [vmem:[#allocation0] sm:$0x3] %vm232, %v231
    %s234 = scalar_lea.vmem [#allocation0], 6
    %235 = vst.msk [vmem:[%s234] sm:$0xc] %vm232, %v231
    %s236 = scalar_lea.vmem [#allocation0], 12
    %237 = vst.msk [vmem:[%s236] sm:$0x30] %vm232, %v231
    %s238 = scalar_lea.vmem [#allocation0], 18
    %239 = vst.msk [vmem:[%s238] sm:$0xc0] %vm232, %v231
    %s240 = scalar_lea.vmem %s0, 36
    %v241 = vld [vmem:[%s240] sm:$0x1]
    %s242 = scalar_lea.vmem %s0, 156
    %s243 = smov 6
    %v244 = vld [vmem:[%s242] ss:$-56 sm:%s243]
    %vm245 = vcmask 1042433
    %v246 = vsel %vm245, %v244, %v241
    %s247 = scalar_lea.vmem %s0, 276
    %s248 = smov 24
    %v249 = vld [vmem:[%s247] ss:$-56 sm:%s248]
    %vm250 = vcmask 1044483
    %v251 = vsel %vm250, %v249, %v246
    %s252 = scalar_lea.vmem %s0, 396
    %s253 = smov 96
    %v254 = vld [vmem:[%s252] ss:$-56 sm:%s253]
    %vm255 = vcmask 1046533
    %v256 = vsel %vm255, %v254, %v251
    %s257 = scalar_lea.vmem %s0, 117
    %v258 = vld [vmem:[%s257] sm:$0x80]
    %vm259 = vcmask 1047559
    %v260 = vsel %vm259, %v258, %v256
    %261 = vrot.lane.b32.xlu0 %v260, 64
    %v262 = vpop.permute.xlu0 %261
    %vm263 = vcmask 654848
    %s264 = scalar_lea.vmem [#allocation0], 32
    %265 = vst.msk [vmem:[%s264] sm:$0x3] %vm263, %v262
    %s266 = scalar_lea.vmem [#allocation0], 38
    %267 = vst.msk [vmem:[%s266] sm:$0xc] %vm263, %v262
    %s268 = scalar_lea.vmem [#allocation0], 44
    %269 = vst.msk [vmem:[%s268] sm:$0x30] %vm263, %v262
    %s270 = scalar_lea.vmem [#allocation0], 50
    %271 = vst.msk [vmem:[%s270] sm:$0xc0] %vm263, %v262
    %s272 = scalar_lea.vmem %s0, 3
    %v273 = vld [vmem:[%s272] sm:$0x1]
    %s274 = scalar_lea.vmem %s0, 123
    %s275 = smov 6
    %v276 = vld [vmem:[%s274] ss:$-56 sm:%s275]
    %vm277 = vcmask 1042433
    %v278 = vsel %vm277, %v276, %v273
    %s279 = scalar_lea.vmem %s0, 243
    %s280 = smov 24
    %v281 = vld [vmem:[%s279] ss:$-56 sm:%s280]
    %vm282 = vcmask 1044483
    %v283 = vsel %vm282, %v281, %v278
    %s284 = scalar_lea.vmem %s0, 363
    %s285 = smov 96
    %v286 = vld [vmem:[%s284] ss:$-56 sm:%s285]
    %vm287 = vcmask 1046533
    %v288 = vsel %vm287, %v286, %v283
    %s289 = scalar_lea.vmem %s0, 84
    %v290 = vld [vmem:[%s289] sm:$0x80]
    %vm291 = vcmask 1047559
    %v292 = vsel %vm291, %v290, %v288
    %293 = vrot.lane.b32.xlu0 %v292, 48
    %v294 = vpop.permute.xlu0 %293
    %vm295 = vcmask 523648
    %296 = vst.msk [vmem:[#allocation0] sm:$0x3] %vm295, %v294
    %s297 = scalar_lea.vmem [#allocation0], 6
    %298 = vst.msk [vmem:[%s297] sm:$0xc] %vm295, %v294
    %s299 = scalar_lea.vmem [#allocation0], 12
    %300 = vst.msk [vmem:[%s299] sm:$0x30] %vm295, %v294
    %s301 = scalar_lea.vmem [#allocation0], 18
    %302 = vst.msk [vmem:[%s301] sm:$0xc0] %vm295, %v294
    %s303 = scalar_lea.vmem %s0, 35
    %v304 = vld [vmem:[%s303] sm:$0x1]
    %s305 = scalar_lea.vmem %s0, 155
    %s306 = smov 6
    %v307 = vld [vmem:[%s305] ss:$-56 sm:%s306]
    %vm308 = vcmask 1042433
    %v309 = vsel %vm308, %v307, %v304
    %s310 = scalar_lea.vmem %s0, 275
    %s311 = smov 24
    %v312 = vld [vmem:[%s310] ss:$-56 sm:%s311]
    %vm313 = vcmask 1044483
    %v314 = vsel %vm313, %v312, %v309
    %s315 = scalar_lea.vmem %s0, 395
    %s316 = smov 96
    %v317 = vld [vmem:[%s315] ss:$-56 sm:%s316]
    %vm318 = vcmask 1046533
    %v319 = vsel %vm318, %v317, %v314
    %s320 = scalar_lea.vmem %s0, 116
    %v321 = vld [vmem:[%s320] sm:$0x80]
    %vm322 = vcmask 1047559
    %v323 = vsel %vm322, %v321, %v319
    %324 = vrot.lane.b32.xlu0 %v323, 48
    %v325 = vpop.permute.xlu0 %324
    %vm326 = vcmask 523648
    %s327 = scalar_lea.vmem [#allocation0], 32
    %328 = vst.msk [vmem:[%s327] sm:$0x3] %vm326, %v325
    %s329 = scalar_lea.vmem [#allocation0], 38
    %330 = vst.msk [vmem:[%s329] sm:$0xc] %vm326, %v325
    %s331 = scalar_lea.vmem [#allocation0], 44
    %332 = vst.msk [vmem:[%s331] sm:$0x30] %vm326, %v325
    %s333 = scalar_lea.vmem [#allocation0], 50
    %334 = vst.msk [vmem:[%s333] sm:$0xc0] %vm326, %v325
    %s335 = scalar_lea.vmem %s0, 2
    %v336 = vld [vmem:[%s335] sm:$0x1]
    %s337 = scalar_lea.vmem %s0, 122
    %s338 = smov 6
    %v339 = vld [vmem:[%s337] ss:$-56 sm:%s338]
    %vm340 = vcmask 1042433
    %v341 = vsel %vm340, %v339, %v336
    %s342 = scalar_lea.vmem %s0, 242
    %s343 = smov 24
    %v344 = vld [vmem:[%s342] ss:$-56 sm:%s343]
    %vm345 = vcmask 1044483
    %v346 = vsel %vm345, %v344, %v341
    %s347 = scalar_lea.vmem %s0, 362
    %s348 = smov 96
    %v349 = vld [vmem:[%s347] ss:$-56 sm:%s348]
    %vm350 = vcmask 1046533
    %v351 = vsel %vm350, %v349, %v346
    %s352 = scalar_lea.vmem %s0, 83
    %v353 = vld [vmem:[%s352] sm:$0x80]
    %vm354 = vcmask 1047559
    %v355 = vsel %vm354, %v353, %v351
    %356 = vrot.lane.b32.xlu0 %v355, 32
    %v357 = vpop.permute.xlu0 %356
    %vm358 = vcmask 392448
    %359 = vst.msk [vmem:[#allocation0] sm:$0x3] %vm358, %v357
    %s360 = scalar_lea.vmem [#allocation0], 6
    %361 = vst.msk [vmem:[%s360] sm:$0xc] %vm358, %v357
    %s362 = scalar_lea.vmem [#allocation0], 12
    %363 = vst.msk [vmem:[%s362] sm:$0x30] %vm358, %v357
    %s364 = scalar_lea.vmem [#allocation0], 18
    %365 = vst.msk [vmem:[%s364] sm:$0xc0] %vm358, %v357
    %s366 = scalar_lea.vmem %s0, 34
    %v367 = vld [vmem:[%s366] sm:$0x1]
    %s368 = scalar_lea.vmem %s0, 154
    %s369 = smov 6
    %v370 = vld [vmem:[%s368] ss:$-56 sm:%s369]
    %vm371 = vcmask 1042433
    %v372 = vsel %vm371, %v370, %v367
    %s373 = scalar_lea.vmem %s0, 274
    %s374 = smov 24
    %v375 = vld [vmem:[%s373] ss:$-56 sm:%s374]
    %vm376 = vcmask 1044483
    %v377 = vsel %vm376, %v375, %v372
    %s378 = scalar_lea.vmem %s0, 394
    %s379 = smov 96
    %v380 = vld [vmem:[%s378] ss:$-56 sm:%s379]
    %vm381 = vcmask 1046533
    %v382 = vsel %vm381, %v380, %v377
    %s383 = scalar_lea.vmem %s0, 115
    %v384 = vld [vmem:[%s383] sm:$0x80]
    %vm385 = vcmask 1047559
    %v386 = vsel %vm385, %v384, %v382
    %387 = vrot.lane.b32.xlu0 %v386, 32
    %v388 = vpop.permute.xlu0 %387
    %vm389 = vcmask 392448
    %s390 = scalar_lea.vmem [#allocation0], 32
    %391 = vst.msk [vmem:[%s390] sm:$0x3] %vm389, %v388
    %s392 = scalar_lea.vmem [#allocation0], 38
    %393 = vst.msk [vmem:[%s392] sm:$0xc] %vm389, %v388
    %s394 = scalar_lea.vmem [#allocation0], 44
    %395 = vst.msk [vmem:[%s394] sm:$0x30] %vm389, %v388
    %s396 = scalar_lea.vmem [#allocation0], 50
    %397 = vst.msk [vmem:[%s396] sm:$0xc0] %vm389, %v388
    %s398 = scalar_lea.vmem %s0, 1
    %v399 = vld [vmem:[%s398] sm:$0x1]
    %s400 = scalar_lea.vmem %s0, 121
    %s401 = smov 6
    %v402 = vld [vmem:[%s400] ss:$-56 sm:%s401]
    %vm403 = vcmask 1042433
    %v404 = vsel %vm403, %v402, %v399
    %s405 = scalar_lea.vmem %s0, 241
    %s406 = smov 24
    %v407 = vld [vmem:[%s405] ss:$-56 sm:%s406]
    %vm408 = vcmask 1044483
    %v409 = vsel %vm408, %v407, %v404
    %s410 = scalar_lea.vmem %s0, 361
    %s411 = smov 96
    %v412 = vld [vmem:[%s410] ss:$-56 sm:%s411]
    %vm413 = vcmask 1046533
    %v414 = vsel %vm413, %v412, %v409
    %s415 = scalar_lea.vmem %s0, 82
    %v416 = vld [vmem:[%s415] sm:$0x80]
    %vm417 = vcmask 1047559
    %v418 = vsel %vm417, %v416, %v414
    %419 = vrot.lane.b32.xlu0 %v418, 16
    %v420 = vpop.permute.xlu0 %419
    %vm421 = vcmask 261248
    %422 = vst.msk [vmem:[#allocation0] sm:$0x3] %vm421, %v420
    %s423 = scalar_lea.vmem [#allocation0], 6
    %424 = vst.msk [vmem:[%s423] sm:$0xc] %vm421, %v420
    %s425 = scalar_lea.vmem [#allocation0], 12
    %426 = vst.msk [vmem:[%s425] sm:$0x30] %vm421, %v420
    %s427 = scalar_lea.vmem [#allocation0], 18
    %428 = vst.msk [vmem:[%s427] sm:$0xc0] %vm421, %v420
    %s429 = scalar_lea.vmem %s0, 33
    %v430 = vld [vmem:[%s429] sm:$0x1]
    %s431 = scalar_lea.vmem %s0, 153
    %s432 = smov 6
    %v433 = vld [vmem:[%s431] ss:$-56 sm:%s432]
    %vm434 = vcmask 1042433
    %v435 = vsel %vm434, %v433, %v430
    %s436 = scalar_lea.vmem %s0, 273
    %s437 = smov 24
    %v438 = vld [vmem:[%s436] ss:$-56 sm:%s437]
    %vm439 = vcmask 1044483
    %v440 = vsel %vm439, %v438, %v435
    %s441 = scalar_lea.vmem %s0, 393
    %s442 = smov 96
    %v443 = vld [vmem:[%s441] ss:$-56 sm:%s442]
    %vm444 = vcmask 1046533
    %v445 = vsel %vm444, %v443, %v440
    %s446 = scalar_lea.vmem %s0, 114
    %v447 = vld [vmem:[%s446] sm:$0x80]
    %vm448 = vcmask 1047559
    %v449 = vsel %vm448, %v447, %v445
    %450 = vrot.lane.b32.xlu0 %v449, 16
    %v451 = vpop.permute.xlu0 %450
    %vm452 = vcmask 261248
    %s453 = scalar_lea.vmem [#allocation0], 32
    %454 = vst.msk [vmem:[%s453] sm:$0x3] %vm452, %v451
    %s455 = scalar_lea.vmem [#allocation0], 38
    %456 = vst.msk [vmem:[%s455] sm:$0xc] %vm452, %v451
    %s457 = scalar_lea.vmem [#allocation0], 44
    %458 = vst.msk [vmem:[%s457] sm:$0x30] %vm452, %v451
    %s459 = scalar_lea.vmem [#allocation0], 50
    %460 = vst.msk [vmem:[%s459] sm:$0xc0] %vm452, %v451
    %s462 = ssub.s32 4, 1
    %v463 = vld [vmem:[#allocation0] sm:%s462]
    %s465 = ssub.s32 4, 1
    %466 = vst [vmem:[%s1] sm:%s465] %v463
    %s467 = scalar_lea.vmem [#allocation0], 8
    %v468 = vld [vmem:[%s467] sm:%s462]
    %s470 = ssub.s32 4, 1
    %s471 = scalar_lea.vmem %s1, 2
    %472 = vst [vmem:[%s471] sm:%s470] %v468
    %s473 = scalar_lea.vmem [#allocation0], 16
    %v474 = vld [vmem:[%s473] sm:%s462]
    %s476 = ssub.s32 4, 1
    %s477 = scalar_lea.vmem %s1, 4
    %478 = vst [vmem:[%s477] sm:%s476] %v474
    %s479 = scalar_lea.vmem [#allocation0], 24
    %v480 = vld [vmem:[%s479] sm:%s462]
    %s482 = ssub.s32 4, 1
    %s483 = scalar_lea.vmem %s1, 6
    %484 = vst [vmem:[%s483] sm:%s482] %v480
    %s485 = scalar_lea.vmem [#allocation0], 32
    %v486 = vld [vmem:[%s485] sm:%s462]
    %s488 = ssub.s32 4, 1
    %s489 = scalar_lea.vmem %s1, 8
    %490 = vst [vmem:[%s489] sm:%s488] %v486
    %s491 = scalar_lea.vmem [#allocation0], 40
    %v492 = vld [vmem:[%s491] sm:%s462]
    %s494 = ssub.s32 4, 1
    %s495 = scalar_lea.vmem %s1, 10
    %496 = vst [vmem:[%s495] sm:%s494] %v492
    %s497 = scalar_lea.vmem [#allocation0], 48
    %v498 = vld [vmem:[%s497] sm:%s462]
    %s500 = ssub.s32 4, 1
    %s501 = scalar_lea.vmem %s1, 12
    %502 = vst [vmem:[%s501] sm:%s500] %v498
    %s503 = scalar_lea.vmem [#allocation0], 56
    %v504 = vld [vmem:[%s503] sm:%s462]
    %s506 = ssub.s32 4, 1
    %s507 = scalar_lea.vmem %s1, 14
    %508 = vst [vmem:[%s507] sm:%s506] %v504

// kernel: secure_loss_reconstruction.1
$region0: #{secure_loss_reconstruction.1}
  #allocation0 [shape = 'u32[]', space=smem, size = 0x4, offset = 0x4, fixed_abs, tag = 'smem constant byte address 0x4 - core index']
  #allocation1 [shape = 'u32[72,128]{1,0:T(1,128)}', space=vmem, size = 0x9000, scoped, tag = 'internal scratch']
  %s0 = inlined_call_operand.vmem [shape: f32[2,1024], index: 0, kind: input, shape index: {}]
  %s1 = inlined_call_operand.vmem [shape: f32[2,1024], index: 1, kind: input, shape index: {}]
  %s2 = inlined_call_operand.vmem [shape: f32[2,1024], index: 2, kind: input, shape index: {}]
  %s3 = inlined_call_operand.vmem [shape: f32[1,2,128], index: 3, kind: output, shape index: {}]
  %s4 = sld [smem:[#allocation0]]
  $region22: #{secure_loss_reconstruction.1} parent=0
    _
  %s6 = ssub.s32 1, %s4
  %s7 = scalar_select 0, %s6, %s4
  // Predicated region
  $region2: #{secure_loss_reconstruction.1} parent=0 // pred_check
    _
  $region3: #{secure_loss_reconstruction.1} parent=0 // pred_check_branch
    %9 = sbr.rel (0) target = $region5
  $region4: #{secure_loss_reconstruction.1} parent=0 // pred_region
    _
  $region5: #{secure_loss_reconstruction.1} parent=0 // pred_fallthru
    _
  // Predicated region
  $region6: #{secure_loss_reconstruction.1} parent=0 // pred_check
    _
  $region7: #{secure_loss_reconstruction.1} parent=0 // pred_check_branch
    %11 = sbr.rel (0) target = $region9
  $region8: #{secure_loss_reconstruction.1} parent=0 // pred_region
    _
  $region9: #{secure_loss_reconstruction.1} parent=0 // pred_fallthru
    _
  // Predicated region
  $region10: #{secure_loss_reconstruction.1} parent=0 // pred_check
    _
  $region11: #{secure_loss_reconstruction.1} parent=0 // pred_check_branch
    %13 = sbr.rel (0) target = $region13
  $region12: #{secure_loss_reconstruction.1} parent=0 // pred_region
    _
  $region13: #{secure_loss_reconstruction.1} parent=0 // pred_fallthru
    _
  %v14 = vld [vmem:[%s0] sm:$0xff]
  %v15 = vld [vmem:[%s0 + $0x8] sm:$0xff]
  %v16 = vld [vmem:[%s1] sm:$0xff]
  %v17 = vld [vmem:[%s1 + $0x8] sm:$0xff]
  %v18 = vsub.f32 %v14, %v16
  %v19 = vsub.f32 %v15, %v17
  %v20 = vld [vmem:[%s2] sm:$0xff]
  %v21 = vld [vmem:[%s2 + $0x8] sm:$0xff]
  %v22 = vsub.f32 %v14, %v20
  %v23 = vsub.f32 %v15, %v21
  %v24 = vmul.f32 %v18, %v18
  %v25 = vmul.f32 %v19, %v19
  %v26 = vmul.f32 %v22, %v22
  %v27 = vmul.f32 %v23, %v23
  %v29 = vrot.slane %v24, 2
  %v31 = vadd.f32 %v24, %v29
  %v33 = vrot.slane %v26, 2
  %v35 = vadd.f32 %v26, %v33
  %v36 = vrot.slane %v24, 4
  %v38 = vadd.f32 %v31, %v36
  %v39 = vrot.slane %v26, 4
  %v41 = vadd.f32 %v35, %v39
  %v42 = vrot.slane %v24, 6
  %v44 = vadd.f32 %v38, %v42
  %v45 = vrot.slane %v26, 6
  %v47 = vadd.f32 %v41, %v45
  %v48 = vadd.f32 %v44, %v25
  %v49 = vadd.f32 %v47, %v27
  %v51 = vrot.slane %v25, 2
  %v53 = vadd.f32 %v48, %v51
  %v55 = vrot.slane %v27, 2
  %v57 = vadd.f32 %v49, %v55
  %v58 = vrot.slane %v25, 4
  %v60 = vadd.f32 %v53, %v58
  %v61 = vrot.slane %v27, 4
  %v63 = vadd.f32 %v57, %v61
  %v64 = vrot.slane %v25, 6
  %v66 = vadd.f32 %v60, %v64
  %v67 = vrot.slane %v27, 6
  %v69 = vadd.f32 %v63, %v67
  %vm70 = vcmask 1041408
  %v71 = vsel %vm70, %v66, 0.0
  %v72 = vrot.slane %v71, 4
  %v73 = vadd.f32 %v71, %v72
  %v74 = vrot.slane %v73, 2
  %v75 = vadd.f32 %v73, %v74
  %v76 = vrot.slane %v75, 1
  %v77 = vadd.f32 %v75, %v76
  %v78 = vsel %vm70, %v69, 0.0
  %v79 = vrot.slane %v78, 4
  %v80 = vadd.f32 %v78, %v79
  %v81 = vrot.slane %v80, 2
  %v82 = vadd.f32 %v80, %v81
  %v83 = vrot.slane %v82, 1
  %v84 = vadd.f32 %v82, %v83
  %vm85 = vcmask 1040384
  %v86 = vsel %vm85, %v77, %v84
  %87 = vst [vmem:[%s3] sm:$0x3] %v86
  // Predicated region
  $region14: #{secure_loss_reconstruction.1} parent=0 // pred_check
    _
  $region15: #{secure_loss_reconstruction.1} parent=0 // pred_check_branch
    %89 = sbr.rel (0) target = $region17
  $region16: #{secure_loss_reconstruction.1} parent=0 // pred_region
    _
  $region17: #{secure_loss_reconstruction.1} parent=0 // pred_fallthru
    _
  // Predicated region
  $region18: #{secure_loss_reconstruction.1} parent=0 // pred_check
    _
  $region19: #{secure_loss_reconstruction.1} parent=0 // pred_check_branch
    %91 = sbr.rel (0) target = $region21
  $region20: #{secure_loss_reconstruction.1} parent=0 // pred_region
    _
  $region21: #{secure_loss_reconstruction.1} parent=0 // pred_fallthru
    _

</llo_original>
